<compile_context>
chip_gen: v5e
topology: v5e:2x2
jax: 0.10.0
libtpu: 0.0.40
codegen_flags: <defaults>
</compile_context>

<pallas_src>
import functools

import jax
import jax.numpy as jnp
from jax.experimental import pallas as pl
from jax.experimental.pallas import tpu as pltpu

ROPE_MAX_LEN = 128

_TARGET_BLOCK_BYTES = 4 << 20      # per-block x footprint target (~4 MiB)
_MAX_BLOCK_BYTES = 8 << 20         # hard cap after sublane round-up
_MIN_SPLIT_BLOCK_BYTES = 1 << 20   # only force >=2 grid steps if halves stay >=1 MiB
_VMEM_LIMIT_CAP = 48 << 20         # keep scoped VMEM request under v7x's 64 MiB


def _sublane_multiple(dtype):
    """Native sublane tile height: 8 for f32, 16 for bf16, 32 for 1-byte types."""
    return max(8, 32 // jnp.dtype(dtype).itemsize)


def _make_rope_tables_flat(S, D, base_freq, max_len, table_dtype):
    """cos / sign-baked sin tables, flattened to (1, S*D).  Plain-JAX glue.

    Angles / cos / sin are always computed in f32; only the final tables are
    cast to `table_dtype` (bf16 when the input is bf16, else f32).
    """
    positions = jnp.arange(max_len, dtype=jnp.float32)                       # (L,)
    thetas = base_freq ** (-jnp.arange(0, D, 2, dtype=jnp.float32) / D)      # (D/2,)
    freqs = positions[:, None] * thetas[None, :]                             # (L, D/2)
    cos = jnp.repeat(jnp.cos(freqs), 2, axis=-1)[:S, :D]                     # (S, D)
    sin = jnp.repeat(jnp.sin(freqs), 2, axis=-1)[:S, :D]                     # (S, D)

    L = S * D
    cos_flat = cos.reshape(1, L)
    sin_flat = sin.reshape(1, L)
    parity = (jnp.arange(L, dtype=jnp.int32) % 2)[None, :]                   # (1, L)
    # out[j even] += -sin[j] * x[j+1]   ;   out[j odd] += +sin[j] * x[j-1]
    sin_even = jnp.where(parity == 0, -sin_flat, 0.0)
    sin_odd = jnp.where(parity == 1, sin_flat, 0.0)
    return (cos_flat.astype(table_dtype),
            sin_even.astype(table_dtype),
            sin_odd.astype(table_dtype))


def _rope_kernel(x_ref, cos_ref, sin_e_ref, sin_o_ref, o_ref):
    x = x_ref[...]                                   # (TN, L)
    L = x.shape[-1]
    # pltpu.roll requires non-negative shifts: roll(x, L-1) -> x[j+1],
    # roll(x, 1) -> x[j-1].
    x_next = pltpu.roll(x, shift=L - 1, axis=1)      # x_next[..., j] = x[..., j+1]
    x_prev = pltpu.roll(x, shift=1, axis=1)          # x_prev[..., j] = x[..., j-1]
    out = (x * cos_ref[...]
           + x_next * sin_e_ref[...]
           + x_prev * sin_o_ref[...])
    o_ref[...] = out.astype(o_ref.dtype)


def _pick_tn(N, row_bytes, sublane):
    """Rows per block: ~_TARGET_BLOCK_BYTES, sublane-aligned, >=2 grid steps
    when the halves are still big enough to be worth splitting."""
    if N <= sublane:
        return N                                   # full dim -> no sublane constraint
    tn = max(1, _TARGET_BLOCK_BYTES // max(1, row_bytes))
    tn = min(tn, N)
    # Give v7x's 2 TensorCores work: only skip splitting if each half would be
    # too small (< ~1 MiB) to beat the per-step overhead anyway.
    if tn >= N and ((N + 1) // 2) * row_bytes >= _MIN_SPLIT_BLOCK_BYTES:
        tn = (N + 1) // 2
    if tn >= N:
        return N
    tn = max(sublane, (tn // sublane) * sublane)   # dtype-aware sublane alignment
    # Clamp the rounded-up block against the VMEM budget (only reachable for
    # very large rows, i.e. if max_len is raised).
    while tn > sublane and tn * row_bytes > _MAX_BLOCK_BYTES:
        tn -= sublane
    return min(tn, N)


@functools.partial(jax.jit, static_argnames=("base_freq", "max_len"))
def rope_forward(x, *, base_freq=10000.0, max_len=ROPE_MAX_LEN):
    """x: (B, H, S, D). Returns same shape/dtype."""
    B, H, S, D = x.shape
    assert D % 2 == 0, "RoPE head_dim must be even"
    assert S <= max_len, f"sequence length {S} exceeds RoPE max_len {max_len}"

    # bf16 inputs -> bf16 tables (packed bf16 VALU on v6e/v7x, no f32 promotion);
    # everything else keeps f32 tables.
    table_dtype = jnp.bfloat16 if x.dtype == jnp.bfloat16 else jnp.float32
    cos, sin_e, sin_o = _make_rope_tables_flat(S, D, base_freq, max_len, table_dtype)

    N = B * H
    L = S * D
    x_flat = x.reshape(N, L)                         # contiguous, no-copy merge

    itemsize = x.dtype.itemsize
    row_bytes = L * itemsize
    sublane = _sublane_multiple(x.dtype)
    TN = _pick_tn(N, row_bytes, sublane)
    grid = (pl.cdiv(N, TN),)

    # Explicit scoped-VMEM budget: 2x double-buffered input + output blocks,
    # double-buffered tables, plus headroom; capped well under v7x's 64 MiB.
    block_bytes = TN * L * itemsize
    table_bytes = 3 * L * jnp.dtype(table_dtype).itemsize
    vmem_needed = 4 * block_bytes + 2 * table_bytes + (2 << 20)
    vmem_limit = int(min(max(vmem_needed, 16 << 20), _VMEM_LIMIT_CAP))

    cost = pl.CostEstimate(
        flops=5 * N * L,
        transcendentals=0,
        bytes_accessed=2 * N * L * itemsize + 3 * L * jnp.dtype(table_dtype).itemsize,
    )

    out_flat = pl.pallas_call(
        _rope_kernel,
        out_shape=jax.ShapeDtypeStruct((N, L), x.dtype),
        grid_spec=pltpu.PrefetchScalarGridSpec(
            num_scalar_prefetch=0,
            grid=grid,
            in_specs=[
                pl.BlockSpec((TN, L), lambda i: (i, 0)),
                pl.BlockSpec((1, L), lambda i: (0, 0)),   # cos: VMEM-resident
                pl.BlockSpec((1, L), lambda i: (0, 0)),   # sin_even
                pl.BlockSpec((1, L), lambda i: (0, 0)),   # sin_odd
            ],
            out_specs=pl.BlockSpec((TN, L), lambda i: (i, 0)),
        ),
        compiler_params=pltpu.CompilerParams(
            dimension_semantics=("parallel",),            # lets v7x use both TCs
            vmem_limit_bytes=vmem_limit,
        ),
        cost_estimate=cost,
    )(x_flat, cos, sin_e, sin_o)

    return out_flat.reshape(B, H, S, D)


def _rope_reference(x, base_freq=10000.0, max_len=ROPE_MAX_LEN):
    """Pure-JAX reference replicating the PyTorch module forward exactly."""
    S, D = x.shape[-2], x.shape[-1]
    positions = jnp.arange(max_len, dtype=jnp.float32)
    thetas = base_freq ** (-jnp.arange(0, D, 2, dtype=jnp.float32) / D)
    freqs = positions[:, None] * thetas[None, :]
    cos = jnp.repeat(jnp.cos(freqs), 2, axis=-1)[:S, :D]
    sin = jnp.repeat(jnp.sin(freqs), 2, axis=-1)[:S, :D]
    x_pairs = x.reshape(*x.shape[:-1], -1, 2)
    rot = jnp.stack([-x_pairs[..., 1], x_pairs[..., 0]], axis=-1).reshape(*x.shape)
    return x * cos + rot * sin


if __name__ == "__main__":
    key = jax.random.PRNGKey(0)
    B, H, S, D = 2, 4, 16, 32
    x = jax.random.normal(key, (B, H, S, D), dtype=jnp.float32)

    out = rope_forward(x)
    jax.block_until_ready(out)

    ref = _rope_reference(x)
    assert out.shape == x.shape and out.dtype == x.dtype
    assert jnp.allclose(out, ref, atol=1e-5, rtol=1e-5), "mismatch vs reference"

    print("KERNEL_OK")
</pallas_src>

<mosaic_0001>
module attributes {stable_mosaic.version = 11 : i64} {
  func.func @_rope_kernel(%arg0: i32, %arg1: memref<8x512xf32, #tpu.memory_space<vmem>>, %arg2: memref<1x512xf32, #tpu.memory_space<vmem>>, %arg3: memref<1x512xf32, #tpu.memory_space<vmem>>, %arg4: memref<1x512xf32, #tpu.memory_space<vmem>>, %arg5: memref<8x512xf32, #tpu.memory_space<vmem>>) attributes {dimension_semantics = [#tpu.dimension_semantics<parallel>], iteration_bounds = array<i64: 1>, scalar_prefetch = 0 : i64, scratch_operands = 0 : i64, tpu.core_type = #tpu.core_type<tc>, window_params = [{transform_indices = @transform_0, window_bounds = array<i64: 8, 512>}, {pipeline_mode = #tpu.pipeline_mode<synchronous>, transform_indices = @transform_1, window_bounds = array<i64: 1, 512>}, {pipeline_mode = #tpu.pipeline_mode<synchronous>, transform_indices = @transform_2, window_bounds = array<i64: 1, 512>}, {pipeline_mode = #tpu.pipeline_mode<synchronous>, transform_indices = @transform_3, window_bounds = array<i64: 1, 512>}, {transform_indices = @transform_4, window_bounds = array<i64: 8, 512>}]} {
    %c0 = arith.constant 0 : index
    %c0_0 = arith.constant 0 : index
    %0 = vector.load %arg1[%c0, %c0_0] : memref<8x512xf32, #tpu.memory_space<vmem>>, vector<8x512xf32>
    %c511_i32 = arith.constant 511 : i32
    %1 = tpu.dynamic_rotate %0 by %c511_i32 dim 1 : vector<8x512xf32>, i32 -> vector<8x512xf32>
    %c1_i32 = arith.constant 1 : i32
    %2 = tpu.dynamic_rotate %0 by %c1_i32 dim 1 : vector<8x512xf32>, i32 -> vector<8x512xf32>
    %c0_1 = arith.constant 0 : index
    %c0_2 = arith.constant 0 : index
    %3 = vector.load %arg2[%c0_1, %c0_2] : memref<1x512xf32, #tpu.memory_space<vmem>>, vector<1x512xf32>
    %4 = vector.broadcast %3 : vector<1x512xf32> to vector<8x512xf32>
    %5 = arith.mulf %0, %4 : vector<8x512xf32>
    %c0_3 = arith.constant 0 : index
    %c0_4 = arith.constant 0 : index
    %6 = vector.load %arg3[%c0_3, %c0_4] : memref<1x512xf32, #tpu.memory_space<vmem>>, vector<1x512xf32>
    %7 = vector.broadcast %6 : vector<1x512xf32> to vector<8x512xf32>
    %8 = arith.mulf %1, %7 : vector<8x512xf32>
    %9 = arith.addf %5, %8 : vector<8x512xf32>
    %c0_5 = arith.constant 0 : index
    %c0_6 = arith.constant 0 : index
    %10 = vector.load %arg4[%c0_5, %c0_6] : memref<1x512xf32, #tpu.memory_space<vmem>>, vector<1x512xf32>
    %11 = vector.broadcast %10 : vector<1x512xf32> to vector<8x512xf32>
    %12 = arith.mulf %2, %11 : vector<8x512xf32>
    %13 = arith.addf %9, %12 : vector<8x512xf32>
    %c0_7 = arith.constant 0 : index
    %c0_8 = arith.constant 0 : index
    %14 = vector.load %arg5[%c0_7, %c0_8] : memref<8x512xf32, #tpu.memory_space<vmem>>, vector<8x512xf32>
    tpu.vector_store %arg5[%c0_7, %c0_8], %13 {strides = array<i32>} : memref<8x512xf32, #tpu.memory_space<vmem>>, vector<8x512xf32>,
    return
  }
  func.func @transform_0(%arg0: i32) -> (i32, i32) {
    %c0_i32 = arith.constant 0 : i32
    %c0_i32_0 = arith.constant 0 : i32
    return %arg0, %c0_i32 : i32, i32
  }
  func.func @transform_1(%arg0: i32) -> (i32, i32) {
    %c0_i32 = arith.constant 0 : i32
    %c0_i32_0 = arith.constant 0 : i32
    %c0_i32_1 = arith.constant 0 : i32
    return %c0_i32, %c0_i32_0 : i32, i32
  }
  func.func @transform_2(%arg0: i32) -> (i32, i32) {
    %c0_i32 = arith.constant 0 : i32
    %c0_i32_0 = arith.constant 0 : i32
    %c0_i32_1 = arith.constant 0 : i32
    return %c0_i32, %c0_i32_0 : i32, i32
  }
  func.func @transform_3(%arg0: i32) -> (i32, i32) {
    %c0_i32 = arith.constant 0 : i32
    %c0_i32_0 = arith.constant 0 : i32
    %c0_i32_1 = arith.constant 0 : i32
    return %c0_i32, %c0_i32_0 : i32, i32
  }
  func.func @transform_4(%arg0: i32) -> (i32, i32) {
    %c0_i32 = arith.constant 0 : i32
    %c0_i32_0 = arith.constant 0 : i32
    return %arg0, %c0_i32 : i32, i32
  }
}

</mosaic_0001>

<llo_original>
// kernel: rope_forward.1
$region0: #{rope_forward.1}
  #allocation0 [shape = 'u32[]', space=smem, size = 0x4, offset = 0x4, fixed_abs, tag = 'smem constant byte address 0x4 - core index']
  #allocation1 [shape = 'u32[72,128]{1,0:T(1,128)}', space=vmem, size = 0x9000, scoped, tag = 'internal scratch']
  %s0 = inlined_call_operand.vmem [shape: f32[8,512], index: 0, kind: input, shape index: {}]
  %s1 = inlined_call_operand.vmem [shape: f32[1,512], index: 1, kind: input, shape index: {}]
  %s2 = inlined_call_operand.vmem [shape: f32[1,512], index: 2, kind: input, shape index: {}]
  %s3 = inlined_call_operand.vmem [shape: f32[1,512], index: 3, kind: input, shape index: {}]
  %s4 = inlined_call_operand.vmem [shape: f32[8,512], index: 4, kind: output, shape index: {}]
  %s5 = sld [smem:[#allocation0]]
  $region26: #{rope_forward.1} parent=0
    _
  %s7 = ssub.s32 1, %s5
  %s8 = scalar_select 0, %s7, %s5
  // Predicated region
  $region2: #{rope_forward.1} parent=0 // pred_check
    _
  $region3: #{rope_forward.1} parent=0 // pred_check_branch
    %10 = sbr.rel (0) target = $region5
  $region4: #{rope_forward.1} parent=0 // pred_region
    _
  $region5: #{rope_forward.1} parent=0 // pred_fallthru
    _
  // Predicated region
  $region6: #{rope_forward.1} parent=0 // pred_check
    _
  $region7: #{rope_forward.1} parent=0 // pred_check_branch
    %12 = sbr.rel (0) target = $region9
  $region8: #{rope_forward.1} parent=0 // pred_region
    _
  $region9: #{rope_forward.1} parent=0 // pred_fallthru
    _
  // Predicated region
  $region10: #{rope_forward.1} parent=0 // pred_check
    _
  $region11: #{rope_forward.1} parent=0 // pred_check_branch
    %14 = sbr.rel (0) target = $region13
  $region12: #{rope_forward.1} parent=0 // pred_region
    _
  $region13: #{rope_forward.1} parent=0 // pred_fallthru
    _
  // Predicated region
  $region14: #{rope_forward.1} parent=0 // pred_check
    _
  $region15: #{rope_forward.1} parent=0 // pred_check_branch
    %16 = sbr.rel (0) target = $region17
  $region16: #{rope_forward.1} parent=0 // pred_region
    _
  $region17: #{rope_forward.1} parent=0 // pred_fallthru
    _
  %v17 = vld [vmem:[%s0] sm:$0xff]
  %v18 = vld [vmem:[%s0 + $0x8] sm:$0xff]
  %v19 = vld [vmem:[%s0 + $0x10] sm:$0xff]
  %v20 = vld [vmem:[%s0 + $0x18] sm:$0xff]
  %21 = vrot.lane.b32.xlu0 %v17, 127
  %v22 = vpop.permute.xlu0 %21
  %23 = vrot.lane.b32.xlu0 %v18, 127
  %v24 = vpop.permute.xlu0 %23
  %25 = vrot.lane.b32.xlu0 %v19, 127
  %v26 = vpop.permute.xlu0 %25
  %27 = vrot.lane.b32.xlu0 %v20, 127
  %v28 = vpop.permute.xlu0 %27
  %v29 = vlaneseq
  %v30 = vand.u32 %v29, 127
  %vm31 = vcmp.lt.s32.totalorder %v30, 127
  %v32 = vsel %vm31, %v26, %v28
  %v33 = vsel %vm31, %v24, %v26
  %v34 = vsel %vm31, %v22, %v24
  %v35 = vsel %vm31, %v28, %v22
  %36 = vrot.lane.b32.xlu0 %v17, 1
  %v37 = vpop.permute.xlu0 %36
  %38 = vrot.lane.b32.xlu0 %v18, 1
  %v39 = vpop.permute.xlu0 %38
  %40 = vrot.lane.b32.xlu0 %v19, 1
  %v41 = vpop.permute.xlu0 %40
  %42 = vrot.lane.b32.xlu0 %v20, 1
  %v43 = vpop.permute.xlu0 %42
  %vm44 = vcmp.lt.s32.totalorder %v30, 1
  %v45 = vsel %vm44, %v41, %v43
  %v46 = vsel %vm44, %v39, %v41
  %v47 = vsel %vm44, %v37, %v39
  %v48 = vsel %vm44, %v43, %v37
  %v49 = vld [vmem:[%s1] sm:$0xf]
  %v51 = vperm.slane %v49, 0
  %v52 = vperm.slane %v49, 1
  %v53 = vperm.slane %v49, 2
  %v54 = vperm.slane %v49, 3
  %v59 = vmul.f32 %v17, %v51
  %v60 = vmul.f32 %v18, %v52
  %v61 = vmul.f32 %v19, %v53
  %v62 = vmul.f32 %v20, %v54
  %v63 = vld [vmem:[%s2] sm:$0xf]
  %v65 = vperm.slane %v63, 0
  %v66 = vperm.slane %v63, 1
  %v67 = vperm.slane %v63, 2
  %v68 = vperm.slane %v63, 3
  %v73 = vmul.f32 %v34, %v65
  %v74 = vmul.f32 %v33, %v66
  %v75 = vmul.f32 %v32, %v67
  %v76 = vmul.f32 %v35, %v68
  %v77 = vadd.f32 %v59, %v73
  %v78 = vadd.f32 %v60, %v74
  %v79 = vadd.f32 %v61, %v75
  %v80 = vadd.f32 %v62, %v76
  %v81 = vld [vmem:[%s3] sm:$0xf]
  %v83 = vperm.slane %v81, 0
  %v84 = vperm.slane %v81, 1
  %v85 = vperm.slane %v81, 2
  %v86 = vperm.slane %v81, 3
  %v91 = vmul.f32 %v48, %v83
  %v92 = vmul.f32 %v47, %v84
  %v93 = vmul.f32 %v46, %v85
  %v94 = vmul.f32 %v45, %v86
  %v95 = vadd.f32 %v77, %v91
  %v96 = vadd.f32 %v78, %v92
  %v97 = vadd.f32 %v79, %v93
  %v98 = vadd.f32 %v80, %v94
  %99 = vst [vmem:[%s4] sm:$0xff] %v95
  %100 = vst [vmem:[%s4 + $0x8] sm:$0xff] %v96
  %101 = vst [vmem:[%s4 + $0x10] sm:$0xff] %v97
  %102 = vst [vmem:[%s4 + $0x18] sm:$0xff] %v98
  // Predicated region
  $region18: #{rope_forward.1} parent=0 // pred_check
    _
  $region19: #{rope_forward.1} parent=0 // pred_check_branch
    %104 = sbr.rel (0) target = $region21
  $region20: #{rope_forward.1} parent=0 // pred_region
    _
  $region21: #{rope_forward.1} parent=0 // pred_fallthru
    _
  // Predicated region
  $region22: #{rope_forward.1} parent=0 // pred_check
    _
  $region23: #{rope_forward.1} parent=0 // pred_check_branch
    %106 = sbr.rel (0) target = $region25
  $region24: #{rope_forward.1} parent=0 // pred_region
    _
  $region25: #{rope_forward.1} parent=0 // pred_fallthru
    _

</llo_original>
